<compile_context>
chip_gen: v5e
topology: v5e:2x2
jax: 0.10.0
libtpu: 0.0.40
codegen_flags: <defaults>
</compile_context>

<pallas_src>
import jax
import jax.numpy as jnp
from jax import lax
from jax.experimental import pallas as pl
from jax.experimental.pallas import tpu as pltpu

THRESHOLD = 0.5
TAU = 2.0

# Indices into the stacked lane-matrix slab (wmat) ...
POOL, M0U, M0M, M0D, M2, M5, MB2, MB5U, MB5M, MB5D = range(10)
# ... and into the stacked scale/bias slab (sb).
S0, B0, S2, B2, S5, B5, SB2, BB2, SB5, BB5 = range(10)


def cell_kernel(x_ref, st_ref, shift_ref, wmat_ref, sb_ref, x3_ref, nst_ref):
    f32 = jnp.float32

    def lif(v):
        return (v * (1.0 / TAU) >= THRESHOLD).astype(f32)

    def dot(a, b):
        return jnp.dot(a, b, preferred_element_type=f32)

    su = shift_ref[0]      # (H,H): out[h] <- in[h-1], zero row 0
    sd = shift_ref[1]      # (H,H): out[h] <- in[h+1], zero row H-1
    a3 = shift_ref[2]      # su + I + sd
    pool = wmat_ref[POOL]  # (L,L) 0/1 W-band x channel identity, block-diag over N

    def conv3x3_bn(spk, iu, im, idn, isc, ib):
        # H-shifts via the tiny left matrices; W-shifts + channel mixing folded
        # into the (128,128) block-banded lane matrices.
        y = (dot(dot(su, spk), wmat_ref[iu])
             + dot(spk, wmat_ref[im])
             + dot(dot(sd, spk), wmat_ref[idn]))
        return y * sb_ref[isc] + sb_ref[ib]

    def conv1x1_bn(spk, im, isc, ib):
        return dot(spk, wmat_ref[im]) * sb_ref[isc] + sb_ref[ib]

    def avgpool3(v):
        # (sum over 3x3 neighbourhood, zero padded) / 9
        return dot(dot(a3, v), pool) * (1.0 / 9.0)

    a_in = x_ref[...] + st_ref[0, :, :]

    # ---- forward path ----
    x1 = conv3x3_bn(lif(a_in), M0U, M0M, M0D, S0, B0)        # op0
    a1 = x1 + st_ref[1, :, :]
    x2 = a_in + conv1x1_bn(lif(a1), M2, S2, B2)              # op1 (Id) + op2
    a2 = x2 + st_ref[2, :, :]
    # op4 is ScaleLayer(*0): dropped (dead work, assumes finite activations)
    x3 = avgpool3(a_in) + conv1x1_bn(lif(a2), M5, S5, B5)    # op3 + op5

    # ---- backward (state-update) path ----
    spk3 = lif(x3)
    # back1 is ScaleLayer(*0): dropped
    nxin = a1 + conv1x1_bn(spk3, MB2, SB2, BB2)              # back0 (Id) + back2
    nx1 = avgpool3(a2) + x3                                  # back3 + back4 (Id)
    nx2 = conv3x3_bn(spk3, MB5U, MB5M, MB5D, SB5, BB5)       # back5

    x3_ref[...] = x3
    nst_ref[0, :, :] = nxin
    nst_ref[1, :, :] = nx1
    nst_ref[2, :, :] = nx2


def pack_params(params, N, H, W, C):
    """Precompute the dense-layout operand slabs for the kernel (once per model)."""
    (w0, s0, b0, w2, s2, b2, w5, s5, b5,
     wb2, sb2, bb2, wb5, sb5, bb5) = params
    f32 = jnp.float32
    G = N * W
    L = G * C

    # H-shift matrices (0/1), applied on the left of the (H, L) activations.
    su = jnp.eye(H, H, k=-1, dtype=f32)            # out[h] <- in[h-1]
    sd = jnp.eye(H, H, k=1, dtype=f32)             # out[h] <- in[h+1]
    a3 = su + jnp.eye(H, dtype=f32) + sd

    wi = jnp.arange(W)
    band = (jnp.abs(wi[:, None] - wi[None, :]) <= 1).astype(f32)
    # 3x3 avg-pool lane matrix: 0/1 band over W (x) channel identity, block-diag over N.
    pool = jnp.kron(jnp.eye(N, dtype=f32), jnp.kron(band, jnp.eye(C, dtype=f32)))

    def lane(v):                                   # (1, C) -> (1, L), repeated per (n, w)
        return jnp.tile(v.reshape(-1), G).reshape(1, L)

    def m1x1(w):                                   # (C, C) -> (L, L) block-diagonal
        return jnp.kron(jnp.eye(G, dtype=f32), w)

    def m3x3(w3):                                  # (3,3,C,C) -> 3 (L, L) lane matrices (per dy)
        d = wi[:, None] - wi[None, :] + 1          # = w_in - w_out + 1  (kernel dx index)
        valid = ((d >= 0) & (d <= 2)).astype(f32)
        dc = jnp.clip(d, 0, 2)
        mats = []
        for dy in range(3):
            blk = w3[dy][dc] * valid[:, :, None, None]             # (W, W, C, C)
            bwc = blk.transpose(0, 2, 1, 3).reshape(W * C, W * C)  # [w_in*C+ci, w_out*C+co]
            mats.append(jnp.kron(jnp.eye(N, dtype=f32), bwc))
        return mats

    m0u, m0m, m0d = m3x3(w0)
    mb5u, mb5m, mb5d = m3x3(wb5)

    shift = jnp.stack([su, sd, a3])                                        # (3, H, H)
    wmat = jnp.stack([pool, m0u, m0m, m0d, m1x1(w2), m1x1(w5),
                      m1x1(wb2), mb5u, mb5m, mb5d])                        # (10, L, L)
    sb = jnp.stack([lane(s0), lane(b0), lane(s2), lane(b2), lane(s5), lane(b5),
                    lane(sb2), lane(bb2), lane(sb5), lane(bb5)])           # (10, 1, L)
    return shift, wmat, sb


def neuronal_cell_backward(x_nchw, state, packed):
    """One forward call of the cell.

    x_nchw: (N, C, H, W) f32.  state: (3, H, N*W*C) stacked (last_xin, last_x1,
    last_x2) kept in the kernel-native dense layout.  Returns (x3 in NCHW, new state).
    """
    N, C, H, W = x_nchw.shape
    L = N * W * C
    # NCHW -> dense (H, N*W*C), lane = n*W*C + w*C + c
    x = jnp.transpose(x_nchw.astype(jnp.float32), (2, 0, 3, 1)).reshape(H, L)
    shift, wmat, sb = packed

    vmem = pl.BlockSpec(memory_space=pltpu.MemorySpace.VMEM)

    x3, nst = pl.pallas_call(
        cell_kernel,
        out_shape=(jax.ShapeDtypeStruct((H, L), jnp.float32),
                   jax.ShapeDtypeStruct((3, H, L), jnp.float32)),
        in_specs=[vmem] * 5,
        out_specs=(vmem, vmem),
    )(x, state, shift, wmat, sb)

    x3_nchw = jnp.transpose(x3.reshape(H, N, W, C), (1, 3, 0, 2))
    return x3_nchw, nst


# ------------------------- pure-JAX reference -------------------------
def _ref_forward(x, lxin, lx1, lx2, params):
    """NHWC reference of one full cell step: returns (x3, new_xin, new_x1, new_x2)."""
    (w0, s0, b0, w2, s2, b2, w5, s5, b5,
     wb2, sb2, bb2, wb5, sb5, bb5) = params
    N, H, W, C = x.shape
    hi = lax.Precision.HIGHEST

    def lif(v):
        return (v * (1.0 / TAU) >= THRESHOLD).astype(jnp.float32)

    def conv1x1_bn(v, w, s, b):
        y = jnp.dot(v.reshape(-1, C), w, precision=hi)
        return (y * s + b).reshape(N, H, W, C)

    def conv3x3_bn(v, w, s, b):
        vp = jnp.pad(v, ((0, 0), (1, 1), (1, 1), (0, 0)))
        acc = jnp.zeros((N * H * W, C), jnp.float32)
        for dy in range(3):
            for dx in range(3):
                acc = acc + jnp.dot(vp[:, dy:dy + H, dx:dx + W, :].reshape(-1, C),
                                    w[dy, dx], precision=hi)
        return (acc * s + b).reshape(N, H, W, C)

    def avgpool3(v):
        vp = jnp.pad(v, ((0, 0), (1, 1), (1, 1), (0, 0)))
        acc = jnp.zeros_like(v)
        for dy in range(3):
            for dx in range(3):
                acc = acc + vp[:, dy:dy + H, dx:dx + W, :]
        return acc * (1.0 / 9.0)

    a_in = x + lxin
    x1 = conv3x3_bn(lif(a_in), w0, s0, b0)
    a1 = x1 + lx1
    x2 = a_in + conv1x1_bn(lif(a1), w2, s2, b2)
    a2 = x2 + lx2
    x3 = avgpool3(a_in) + a1 * 0.0 + conv1x1_bn(lif(a2), w5, s5, b5)
    nxin = a1 + a2 * 0.0 + conv1x1_bn(lif(x3), wb2, sb2, bb2)
    nx1 = avgpool3(a2) + x3
    nx2 = conv3x3_bn(lif(x3), wb5, sb5, bb5)
    return x3, nxin, nx1, nx2


def _make_params(key, C):
    """BN is fused (eval-mode running stats) into a per-channel scale/bias.
    Conv weights are quantized to a 1/64 grid so every conv product is exactly
    representable; kernel/reference differences then reduce to f32 summation
    order, which keeps the hard LIF threshold comparison deterministic."""
    ks = jax.random.split(key, 10)
    eps = 1e-5

    def q(v, g=64.0):
        return jnp.round(v * g) / g

    def bn(kg, kb):
        gamma = 1.0 + 0.1 * jax.random.normal(kg, (1, C), jnp.float32)
        beta = 0.05 * jax.random.normal(kb, (1, C), jnp.float32)
        running_mean = jnp.zeros((1, C), jnp.float32)
        running_var = jnp.ones((1, C), jnp.float32)
        scale = gamma / jnp.sqrt(running_var + eps)
        bias = beta - running_mean * scale
        return scale, bias

    w0 = q(0.3 * jax.random.normal(ks[0], (3, 3, C, C), jnp.float32))   # conv3x3 (ky,kx,Cin,Cout)
    w2 = q(0.3 * jax.random.normal(ks[1], (C, C), jnp.float32))         # conv1x1 (Cin,Cout)
    w5 = q(0.3 * jax.random.normal(ks[2], (C, C), jnp.float32))
    wb2 = q(0.3 * jax.random.normal(ks[3], (C, C), jnp.float32))
    wb5 = q(0.3 * jax.random.normal(ks[4], (3, 3, C, C), jnp.float32))
    s0, b0 = bn(*jax.random.split(ks[5]))
    s2, b2 = bn(*jax.random.split(ks[6]))
    s5, b5 = bn(*jax.random.split(ks[7]))
    sb2, bb2 = bn(*jax.random.split(ks[8]))
    sb5, bb5 = bn(*jax.random.split(ks[9]))
    return (w0, s0, b0, w2, s2, b2, w5, s5, b5,
            wb2, sb2, bb2, wb5, sb5, bb5)


if __name__ == "__main__":
    key = jax.random.PRNGKey(0)
    k_x, k_p = jax.random.split(key)

    Nb, C, Hs, Ws = 2, 4, 16, 16          # in_channel == out_channel == 4
    x_nchw = jnp.round(8.0 * jax.random.normal(k_x, (Nb, C, Hs, Ws), jnp.float32)) / 8.0

    params = _make_params(k_p, C)
    packed = pack_params(params, Nb, Hs, Ws, C)

    Ldim = Nb * Ws * C
    state = jnp.zeros((3, Hs, Ldim), jnp.float32)

    cell = jax.jit(neuronal_cell_backward)

    # pure-JAX NHWC reference of the same two recurrent steps
    x_nhwc = jnp.transpose(x_nchw, (0, 2, 3, 1))
    z = jnp.zeros((Nb, Hs, Ws, C), jnp.float32)
    ref_state = (z, z, z)

    def dense_to_nhwc(d):
        return jnp.transpose(d.reshape(Hs, Nb, Ws, C), (1, 0, 2, 3))

    for step in range(2):
        x3_nchw, state = cell(x_nchw, state, packed)
        jax.block_until_ready(x3_nchw)
        jax.block_until_ready(state)

        x3_r, nxin_r, nx1_r, nx2_r = _ref_forward(x_nhwc, *ref_state, params)
        ref_state = (nxin_r, nx1_r, nx2_r)

        got = (jnp.transpose(x3_nchw, (0, 2, 3, 1)),
               dense_to_nhwc(state[0]),
               dense_to_nhwc(state[1]),
               dense_to_nhwc(state[2]))
        want = (x3_r, nxin_r, nx1_r, nx2_r)
        for name, g, r in zip(("x3", "last_xin", "last_x1", "last_x2"), got, want):
            err = float(jnp.max(jnp.abs(g - r)))
            assert jnp.allclose(g, r, atol=1e-3, rtol=1e-3), (step, name, err)

    print("KERNEL_OK")
</pallas_src>

<mosaic_0001>
module attributes {stable_mosaic.version = 11 : i64} {
  func.func @cell_kernel(%arg0: memref<16x128xf32, #tpu.memory_space<vmem>>, %arg1: memref<3x16x128xf32, #tpu.memory_space<vmem>>, %arg2: memref<3x16x16xf32, #tpu.memory_space<vmem>>, %arg3: memref<10x128x128xf32, #tpu.memory_space<vmem>>, %arg4: memref<10x1x128xf32, #tpu.memory_space<vmem>>, %arg5: memref<16x128xf32, #tpu.memory_space<vmem>>, %arg6: memref<3x16x128xf32, #tpu.memory_space<vmem>>) attributes {dimension_semantics = [], scalar_prefetch = 0 : i64, scratch_operands = 0 : i64, tpu.core_type = #tpu.core_type<tc>} {
    %c0 = arith.constant 0 : index
    %c0_0 = arith.constant 0 : index
    %c0_1 = arith.constant 0 : index
    %0 = vector.load %arg2[%c0, %c0_0, %c0_1] : memref<3x16x16xf32, #tpu.memory_space<vmem>>, vector<1x16x16xf32>
    %1 = vector.shape_cast %0 : vector<1x16x16xf32> to vector<16x16xf32>
    %c1 = arith.constant 1 : index
    %c0_2 = arith.constant 0 : index
    %c0_3 = arith.constant 0 : index
    %2 = vector.load %arg2[%c1, %c0_2, %c0_3] : memref<3x16x16xf32, #tpu.memory_space<vmem>>, vector<1x16x16xf32>
    %3 = vector.shape_cast %2 : vector<1x16x16xf32> to vector<16x16xf32>
    %c2 = arith.constant 2 : index
    %c0_4 = arith.constant 0 : index
    %c0_5 = arith.constant 0 : index
    %4 = vector.load %arg2[%c2, %c0_4, %c0_5] : memref<3x16x16xf32, #tpu.memory_space<vmem>>, vector<1x16x16xf32>
    %5 = vector.shape_cast %4 : vector<1x16x16xf32> to vector<16x16xf32>
    %c0_6 = arith.constant 0 : index
    %c0_7 = arith.constant 0 : index
    %c0_8 = arith.constant 0 : index
    %6 = vector.load %arg3[%c0_6, %c0_7, %c0_8] : memref<10x128x128xf32, #tpu.memory_space<vmem>>, vector<1x128x128xf32>
    %7 = vector.shape_cast %6 : vector<1x128x128xf32> to vector<128x128xf32>
    %c0_9 = arith.constant 0 : index
    %c0_10 = arith.constant 0 : index
    %8 = vector.load %arg0[%c0_9, %c0_10] : memref<16x128xf32, #tpu.memory_space<vmem>>, vector<16x128xf32>
    %c0_11 = arith.constant 0 : index
    %c0_12 = arith.constant 0 : index
    %c0_13 = arith.constant 0 : index
    %9 = vector.load %arg1[%c0_11, %c0_12, %c0_13] : memref<3x16x128xf32, #tpu.memory_space<vmem>>, vector<1x16x128xf32>
    %10 = vector.shape_cast %9 : vector<1x16x128xf32> to vector<16x128xf32>
    %11 = arith.addf %8, %10 : vector<16x128xf32>
    %cst = arith.constant 5.000000e-01 : f32
    %12 = vector.broadcast %cst : f32 to vector<16x128xf32>
    %13 = arith.mulf %11, %12 : vector<16x128xf32>
    %cst_14 = arith.constant 5.000000e-01 : f32
    %14 = vector.broadcast %cst_14 : f32 to vector<16x128xf32>
    %15 = arith.cmpf oge, %13, %14 : vector<16x128xf32>
    %16 = arith.extui %15 : vector<16x128xi1> to vector<16x128xi32>
    %17 = arith.sitofp %16 : vector<16x128xi32> to vector<16x128xf32>
    %cst_15 = arith.constant dense<0.000000e+00> : vector<16x128xf32>
    %18 = tpu.matmul %1, %17, %cst_15 {dimension_numbers = #tpu.dot_dimension_numbers<[1], [0], [0], [1], [0, 0, 1, 1], [], []>} : vector<16x16xf32>, vector<16x128xf32>, vector<16x128xf32> -> vector<16x128xf32>
    %c1_16 = arith.constant 1 : index
    %c0_17 = arith.constant 0 : index
    %c0_18 = arith.constant 0 : index
    %19 = vector.load %arg3[%c1_16, %c0_17, %c0_18] : memref<10x128x128xf32, #tpu.memory_space<vmem>>, vector<1x128x128xf32>
    %20 = vector.shape_cast %19 : vector<1x128x128xf32> to vector<128x128xf32>
    %cst_19 = arith.constant dense<0.000000e+00> : vector<16x128xf32>
    %21 = tpu.matmul %18, %20, %cst_19 {dimension_numbers = #tpu.dot_dimension_numbers<[1], [0], [0], [1], [0, 0, 1, 1], [], []>} : vector<16x128xf32>, vector<128x128xf32>, vector<16x128xf32> -> vector<16x128xf32>
    %c2_20 = arith.constant 2 : index
    %c0_21 = arith.constant 0 : index
    %c0_22 = arith.constant 0 : index
    %22 = vector.load %arg3[%c2_20, %c0_21, %c0_22] : memref<10x128x128xf32, #tpu.memory_space<vmem>>, vector<1x128x128xf32>
    %23 = vector.shape_cast %22 : vector<1x128x128xf32> to vector<128x128xf32>
    %cst_23 = arith.constant dense<0.000000e+00> : vector<16x128xf32>
    %24 = tpu.matmul %17, %23, %cst_23 {dimension_numbers = #tpu.dot_dimension_numbers<[1], [0], [0], [1], [0, 0, 1, 1], [], []>} : vector<16x128xf32>, vector<128x128xf32>, vector<16x128xf32> -> vector<16x128xf32>
    %25 = arith.addf %21, %24 : vector<16x128xf32>
    %cst_24 = arith.constant dense<0.000000e+00> : vector<16x128xf32>
    %26 = tpu.matmul %3, %17, %cst_24 {dimension_numbers = #tpu.dot_dimension_numbers<[1], [0], [0], [1], [0, 0, 1, 1], [], []>} : vector<16x16xf32>, vector<16x128xf32>, vector<16x128xf32> -> vector<16x128xf32>
    %c3 = arith.constant 3 : index
    %c0_25 = arith.constant 0 : index
    %c0_26 = arith.constant 0 : index
    %27 = vector.load %arg3[%c3, %c0_25, %c0_26] : memref<10x128x128xf32, #tpu.memory_space<vmem>>, vector<1x128x128xf32>
    %28 = vector.shape_cast %27 : vector<1x128x128xf32> to vector<128x128xf32>
    %cst_27 = arith.constant dense<0.000000e+00> : vector<16x128xf32>
    %29 = tpu.matmul %26, %28, %cst_27 {dimension_numbers = #tpu.dot_dimension_numbers<[1], [0], [0], [1], [0, 0, 1, 1], [], []>} : vector<16x128xf32>, vector<128x128xf32>, vector<16x128xf32> -> vector<16x128xf32>
    %30 = arith.addf %25, %29 : vector<16x128xf32>
    %c0_28 = arith.constant 0 : index
    %c0_29 = arith.constant 0 : index
    %c0_30 = arith.constant 0 : index
    %31 = vector.load %arg4[%c0_28, %c0_29, %c0_30] : memref<10x1x128xf32, #tpu.memory_space<vmem>>, vector<1x1x128xf32>
    %32 = vector.shape_cast %31 : vector<1x1x128xf32> to vector<1x128xf32>
    %33 = vector.broadcast %32 : vector<1x128xf32> to vector<16x128xf32>
    %34 = arith.mulf %30, %33 : vector<16x128xf32>
    %c1_31 = arith.constant 1 : index
    %c0_32 = arith.constant 0 : index
    %c0_33 = arith.constant 0 : index
    %35 = vector.load %arg4[%c1_31, %c0_32, %c0_33] : memref<10x1x128xf32, #tpu.memory_space<vmem>>, vector<1x1x128xf32>
    %36 = vector.shape_cast %35 : vector<1x1x128xf32> to vector<1x128xf32>
    %37 = vector.broadcast %36 : vector<1x128xf32> to vector<16x128xf32>
    %38 = arith.addf %34, %37 : vector<16x128xf32>
    %c1_34 = arith.constant 1 : index
    %c0_35 = arith.constant 0 : index
    %c0_36 = arith.constant 0 : index
    %39 = vector.load %arg1[%c1_34, %c0_35, %c0_36] : memref<3x16x128xf32, #tpu.memory_space<vmem>>, vector<1x16x128xf32>
    %40 = vector.shape_cast %39 : vector<1x16x128xf32> to vector<16x128xf32>
    %41 = arith.addf %38, %40 : vector<16x128xf32>
    %cst_37 = arith.constant 5.000000e-01 : f32
    %42 = vector.broadcast %cst_37 : f32 to vector<16x128xf32>
    %43 = arith.mulf %41, %42 : vector<16x128xf32>
    %cst_38 = arith.constant 5.000000e-01 : f32
    %44 = vector.broadcast %cst_38 : f32 to vector<16x128xf32>
    %45 = arith.cmpf oge, %43, %44 : vector<16x128xf32>
    %46 = arith.extui %45 : vector<16x128xi1> to vector<16x128xi32>
    %47 = arith.sitofp %46 : vector<16x128xi32> to vector<16x128xf32>
    %c4 = arith.constant 4 : index
    %c0_39 = arith.constant 0 : index
    %c0_40 = arith.constant 0 : index
    %48 = vector.load %arg3[%c4, %c0_39, %c0_40] : memref<10x128x128xf32, #tpu.memory_space<vmem>>, vector<1x128x128xf32>
    %49 = vector.shape_cast %48 : vector<1x128x128xf32> to vector<128x128xf32>
    %cst_41 = arith.constant dense<0.000000e+00> : vector<16x128xf32>
    %50 = tpu.matmul %47, %49, %cst_41 {dimension_numbers = #tpu.dot_dimension_numbers<[1], [0], [0], [1], [0, 0, 1, 1], [], []>} : vector<16x128xf32>, vector<128x128xf32>, vector<16x128xf32> -> vector<16x128xf32>
    %c2_42 = arith.constant 2 : index
    %c0_43 = arith.constant 0 : index
    %c0_44 = arith.constant 0 : index
    %51 = vector.load %arg4[%c2_42, %c0_43, %c0_44] : memref<10x1x128xf32, #tpu.memory_space<vmem>>, vector<1x1x128xf32>
    %52 = vector.shape_cast %51 : vector<1x1x128xf32> to vector<1x128xf32>
    %53 = vector.broadcast %52 : vector<1x128xf32> to vector<16x128xf32>
    %54 = arith.mulf %50, %53 : vector<16x128xf32>
    %c3_45 = arith.constant 3 : index
    %c0_46 = arith.constant 0 : index
    %c0_47 = arith.constant 0 : index
    %55 = vector.load %arg4[%c3_45, %c0_46, %c0_47] : memref<10x1x128xf32, #tpu.memory_space<vmem>>, vector<1x1x128xf32>
    %56 = vector.shape_cast %55 : vector<1x1x128xf32> to vector<1x128xf32>
    %57 = vector.broadcast %56 : vector<1x128xf32> to vector<16x128xf32>
    %58 = arith.addf %54, %57 : vector<16x128xf32>
    %59 = arith.addf %11, %58 : vector<16x128xf32>
    %c2_48 = arith.constant 2 : index
    %c0_49 = arith.constant 0 : index
    %c0_50 = arith.constant 0 : index
    %60 = vector.load %arg1[%c2_48, %c0_49, %c0_50] : memref<3x16x128xf32, #tpu.memory_space<vmem>>, vector<1x16x128xf32>
    %61 = vector.shape_cast %60 : vector<1x16x128xf32> to vector<16x128xf32>
    %62 = arith.addf %59, %61 : vector<16x128xf32>
    %cst_51 = arith.constant dense<0.000000e+00> : vector<16x128xf32>
    %63 = tpu.matmul %5, %11, %cst_51 {dimension_numbers = #tpu.dot_dimension_numbers<[1], [0], [0], [1], [0, 0, 1, 1], [], []>} : vector<16x16xf32>, vector<16x128xf32>, vector<16x128xf32> -> vector<16x128xf32>
    %cst_52 = arith.constant dense<0.000000e+00> : vector<16x128xf32>
    %64 = tpu.matmul %63, %7, %cst_52 {dimension_numbers = #tpu.dot_dimension_numbers<[1], [0], [0], [1], [0, 0, 1, 1], [], []>} : vector<16x128xf32>, vector<128x128xf32>, vector<16x128xf32> -> vector<16x128xf32>
    %cst_53 = arith.constant 0.111111112 : f32
    %65 = vector.broadcast %cst_53 : f32 to vector<16x128xf32>
    %66 = arith.mulf %64, %65 : vector<16x128xf32>
    %cst_54 = arith.constant 5.000000e-01 : f32
    %67 = vector.broadcast %cst_54 : f32 to vector<16x128xf32>
    %68 = arith.mulf %62, %67 : vector<16x128xf32>
    %cst_55 = arith.constant 5.000000e-01 : f32
    %69 = vector.broadcast %cst_55 : f32 to vector<16x128xf32>
    %70 = arith.cmpf oge, %68, %69 : vector<16x128xf32>
    %71 = arith.extui %70 : vector<16x128xi1> to vector<16x128xi32>
    %72 = arith.sitofp %71 : vector<16x128xi32> to vector<16x128xf32>
    %c5 = arith.constant 5 : index
    %c0_56 = arith.constant 0 : index
    %c0_57 = arith.constant 0 : index
    %73 = vector.load %arg3[%c5, %c0_56, %c0_57] : memref<10x128x128xf32, #tpu.memory_space<vmem>>, vector<1x128x128xf32>
    %74 = vector.shape_cast %73 : vector<1x128x128xf32> to vector<128x128xf32>
    %cst_58 = arith.constant dense<0.000000e+00> : vector<16x128xf32>
    %75 = tpu.matmul %72, %74, %cst_58 {dimension_numbers = #tpu.dot_dimension_numbers<[1], [0], [0], [1], [0, 0, 1, 1], [], []>} : vector<16x128xf32>, vector<128x128xf32>, vector<16x128xf32> -> vector<16x128xf32>
    %c4_59 = arith.constant 4 : index
    %c0_60 = arith.constant 0 : index
    %c0_61 = arith.constant 0 : index
    %76 = vector.load %arg4[%c4_59, %c0_60, %c0_61] : memref<10x1x128xf32, #tpu.memory_space<vmem>>, vector<1x1x128xf32>
    %77 = vector.shape_cast %76 : vector<1x1x128xf32> to vector<1x128xf32>
    %78 = vector.broadcast %77 : vector<1x128xf32> to vector<16x128xf32>
    %79 = arith.mulf %75, %78 : vector<16x128xf32>
    %c5_62 = arith.constant 5 : index
    %c0_63 = arith.constant 0 : index
    %c0_64 = arith.constant 0 : index
    %80 = vector.load %arg4[%c5_62, %c0_63, %c0_64] : memref<10x1x128xf32, #tpu.memory_space<vmem>>, vector<1x1x128xf32>
    %81 = vector.shape_cast %80 : vector<1x1x128xf32> to vector<1x128xf32>
    %82 = vector.broadcast %81 : vector<1x128xf32> to vector<16x128xf32>
    %83 = arith.addf %79, %82 : vector<16x128xf32>
    %84 = arith.addf %66, %83 : vector<16x128xf32>
    %cst_65 = arith.constant 5.000000e-01 : f32
    %85 = vector.broadcast %cst_65 : f32 to vector<16x128xf32>
    %86 = arith.mulf %84, %85 : vector<16x128xf32>
    %cst_66 = arith.constant 5.000000e-01 : f32
    %87 = vector.broadcast %cst_66 : f32 to vector<16x128xf32>
    %88 = arith.cmpf oge, %86, %87 : vector<16x128xf32>
    %89 = arith.extui %88 : vector<16x128xi1> to vector<16x128xi32>
    %90 = arith.sitofp %89 : vector<16x128xi32> to vector<16x128xf32>
    %c6 = arith.constant 6 : index
    %c0_67 = arith.constant 0 : index
    %c0_68 = arith.constant 0 : index
    %91 = vector.load %arg3[%c6, %c0_67, %c0_68] : memref<10x128x128xf32, #tpu.memory_space<vmem>>, vector<1x128x128xf32>
    %92 = vector.shape_cast %91 : vector<1x128x128xf32> to vector<128x128xf32>
    %cst_69 = arith.constant dense<0.000000e+00> : vector<16x128xf32>
    %93 = tpu.matmul %90, %92, %cst_69 {dimension_numbers = #tpu.dot_dimension_numbers<[1], [0], [0], [1], [0, 0, 1, 1], [], []>} : vector<16x128xf32>, vector<128x128xf32>, vector<16x128xf32> -> vector<16x128xf32>
    %c6_70 = arith.constant 6 : index
    %c0_71 = arith.constant 0 : index
    %c0_72 = arith.constant 0 : index
    %94 = vector.load %arg4[%c6_70, %c0_71, %c0_72] : memref<10x1x128xf32, #tpu.memory_space<vmem>>, vector<1x1x128xf32>
    %95 = vector.shape_cast %94 : vector<1x1x128xf32> to vector<1x128xf32>
    %96 = vector.broadcast %95 : vector<1x128xf32> to vector<16x128xf32>
    %97 = arith.mulf %93, %96 : vector<16x128xf32>
    %c7 = arith.constant 7 : index
    %c0_73 = arith.constant 0 : index
    %c0_74 = arith.constant 0 : index
    %98 = vector.load %arg4[%c7, %c0_73, %c0_74] : memref<10x1x128xf32, #tpu.memory_space<vmem>>, vector<1x1x128xf32>
    %99 = vector.shape_cast %98 : vector<1x1x128xf32> to vector<1x128xf32>
    %100 = vector.broadcast %99 : vector<1x128xf32> to vector<16x128xf32>
    %101 = arith.addf %97, %100 : vector<16x128xf32>
    %102 = arith.addf %41, %101 : vector<16x128xf32>
    %cst_75 = arith.constant dense<0.000000e+00> : vector<16x128xf32>
    %103 = tpu.matmul %5, %62, %cst_75 {dimension_numbers = #tpu.dot_dimension_numbers<[1], [0], [0], [1], [0, 0, 1, 1], [], []>} : vector<16x16xf32>, vector<16x128xf32>, vector<16x128xf32> -> vector<16x128xf32>
    %cst_76 = arith.constant dense<0.000000e+00> : vector<16x128xf32>
    %104 = tpu.matmul %103, %7, %cst_76 {dimension_numbers = #tpu.dot_dimension_numbers<[1], [0], [0], [1], [0, 0, 1, 1], [], []>} : vector<16x128xf32>, vector<128x128xf32>, vector<16x128xf32> -> vector<16x128xf32>
    %cst_77 = arith.constant 0.111111112 : f32
    %105 = vector.broadcast %cst_77 : f32 to vector<16x128xf32>
    %106 = arith.mulf %104, %105 : vector<16x128xf32>
    %107 = arith.addf %106, %84 : vector<16x128xf32>
    %cst_78 = arith.constant dense<0.000000e+00> : vector<16x128xf32>
    %108 = tpu.matmul %1, %90, %cst_78 {dimension_numbers = #tpu.dot_dimension_numbers<[1], [0], [0], [1], [0, 0, 1, 1], [], []>} : vector<16x16xf32>, vector<16x128xf32>, vector<16x128xf32> -> vector<16x128xf32>
    %c7_79 = arith.constant 7 : index
    %c0_80 = arith.constant 0 : index
    %c0_81 = arith.constant 0 : index
    %109 = vector.load %arg3[%c7_79, %c0_80, %c0_81] : memref<10x128x128xf32, #tpu.memory_space<vmem>>, vector<1x128x128xf32>
    %110 = vector.shape_cast %109 : vector<1x128x128xf32> to vector<128x128xf32>
    %cst_82 = arith.constant dense<0.000000e+00> : vector<16x128xf32>
    %111 = tpu.matmul %108, %110, %cst_82 {dimension_numbers = #tpu.dot_dimension_numbers<[1], [0], [0], [1], [0, 0, 1, 1], [], []>} : vector<16x128xf32>, vector<128x128xf32>, vector<16x128xf32> -> vector<16x128xf32>
    %c8 = arith.constant 8 : index
    %c0_83 = arith.constant 0 : index
    %c0_84 = arith.constant 0 : index
    %112 = vector.load %arg3[%c8, %c0_83, %c0_84] : memref<10x128x128xf32, #tpu.memory_space<vmem>>, vector<1x128x128xf32>
    %113 = vector.shape_cast %112 : vector<1x128x128xf32> to vector<128x128xf32>
    %cst_85 = arith.constant dense<0.000000e+00> : vector<16x128xf32>
    %114 = tpu.matmul %90, %113, %cst_85 {dimension_numbers = #tpu.dot_dimension_numbers<[1], [0], [0], [1], [0, 0, 1, 1], [], []>} : vector<16x128xf32>, vector<128x128xf32>, vector<16x128xf32> -> vector<16x128xf32>
    %115 = arith.addf %111, %114 : vector<16x128xf32>
    %cst_86 = arith.constant dense<0.000000e+00> : vector<16x128xf32>
    %116 = tpu.matmul %3, %90, %cst_86 {dimension_numbers = #tpu.dot_dimension_numbers<[1], [0], [0], [1], [0, 0, 1, 1], [], []>} : vector<16x16xf32>, vector<16x128xf32>, vector<16x128xf32> -> vector<16x128xf32>
    %c9 = arith.constant 9 : index
    %c0_87 = arith.constant 0 : index
    %c0_88 = arith.constant 0 : index
    %117 = vector.load %arg3[%c9, %c0_87, %c0_88] : memref<10x128x128xf32, #tpu.memory_space<vmem>>, vector<1x128x128xf32>
    %118 = vector.shape_cast %117 : vector<1x128x128xf32> to vector<128x128xf32>
    %cst_89 = arith.constant dense<0.000000e+00> : vector<16x128xf32>
    %119 = tpu.matmul %116, %118, %cst_89 {dimension_numbers = #tpu.dot_dimension_numbers<[1], [0], [0], [1], [0, 0, 1, 1], [], []>} : vector<16x128xf32>, vector<128x128xf32>, vector<16x128xf32> -> vector<16x128xf32>
    %120 = arith.addf %115, %119 : vector<16x128xf32>
    %c8_90 = arith.constant 8 : index
    %c0_91 = arith.constant 0 : index
    %c0_92 = arith.constant 0 : index
    %121 = vector.load %arg4[%c8_90, %c0_91, %c0_92] : memref<10x1x128xf32, #tpu.memory_space<vmem>>, vector<1x1x128xf32>
    %122 = vector.shape_cast %121 : vector<1x1x128xf32> to vector<1x128xf32>
    %123 = vector.broadcast %122 : vector<1x128xf32> to vector<16x128xf32>
    %124 = arith.mulf %120, %123 : vector<16x128xf32>
    %c9_93 = arith.constant 9 : index
    %c0_94 = arith.constant 0 : index
    %c0_95 = arith.constant 0 : index
    %125 = vector.load %arg4[%c9_93, %c0_94, %c0_95] : memref<10x1x128xf32, #tpu.memory_space<vmem>>, vector<1x1x128xf32>
    %126 = vector.shape_cast %125 : vector<1x1x128xf32> to vector<1x128xf32>
    %127 = vector.broadcast %126 : vector<1x128xf32> to vector<16x128xf32>
    %128 = arith.addf %124, %127 : vector<16x128xf32>
    %c0_96 = arith.constant 0 : index
    %c0_97 = arith.constant 0 : index
    %129 = vector.load %arg5[%c0_96, %c0_97] : memref<16x128xf32, #tpu.memory_space<vmem>>, vector<16x128xf32>
    tpu.vector_store %arg5[%c0_96, %c0_97], %84 {strides = array<i32>} : memref<16x128xf32, #tpu.memory_space<vmem>>, vector<16x128xf32>,
    %c0_98 = arith.constant 0 : index
    %c0_99 = arith.constant 0 : index
    %c0_100 = arith.constant 0 : index
    %130 = vector.load %arg6[%c0_98, %c0_99, %c0_100] : memref<3x16x128xf32, #tpu.memory_space<vmem>>, vector<1x16x128xf32>
    %131 = vector.shape_cast %130 : vector<1x16x128xf32> to vector<16x128xf32>
    %132 = vector.shape_cast %102 : vector<16x128xf32> to vector<1x16x128xf32>
    tpu.vector_store %arg6[%c0_98, %c0_99, %c0_100], %132 {strides = array<i32>} : memref<3x16x128xf32, #tpu.memory_space<vmem>>, vector<1x16x128xf32>,
    %c1_101 = arith.constant 1 : index
    %c0_102 = arith.constant 0 : index
    %c0_103 = arith.constant 0 : index
    %133 = vector.load %arg6[%c1_101, %c0_102, %c0_103] : memref<3x16x128xf32, #tpu.memory_space<vmem>>, vector<1x16x128xf32>
    %134 = vector.shape_cast %133 : vector<1x16x128xf32> to vector<16x128xf32>
    %135 = vector.shape_cast %107 : vector<16x128xf32> to vector<1x16x128xf32>
    tpu.vector_store %arg6[%c1_101, %c0_102, %c0_103], %135 {strides = array<i32>} : memref<3x16x128xf32, #tpu.memory_space<vmem>>, vector<1x16x128xf32>,
    %c2_104 = arith.constant 2 : index
    %c0_105 = arith.constant 0 : index
    %c0_106 = arith.constant 0 : index
    %136 = vector.load %arg6[%c2_104, %c0_105, %c0_106] : memref<3x16x128xf32, #tpu.memory_space<vmem>>, vector<1x16x128xf32>
    %137 = vector.shape_cast %136 : vector<1x16x128xf32> to vector<16x128xf32>
    %138 = vector.shape_cast %128 : vector<16x128xf32> to vector<1x16x128xf32>
    tpu.vector_store %arg6[%c2_104, %c0_105, %c0_106], %138 {strides = array<i32>} : memref<3x16x128xf32, #tpu.memory_space<vmem>>, vector<1x16x128xf32>,
    return
  }
}

</mosaic_0001>

<llo_original>
// kernel: neuronal_cell_backward.1
$region0: #{neuronal_cell_backward.1}
  #allocation0 [shape = 'u32[]', space=smem, size = 0x4, offset = 0x4, fixed_abs, tag = 'smem constant byte address 0x4 - core index']
  #allocation1 [shape = 'u32[72,128]{1,0:T(1,128)}', space=vmem, size = 0x9000, scoped, tag = 'internal scratch']
  %s0 = inlined_call_operand.vmem [shape: f32[16,128], index: 0, kind: input, shape index: {}]
  %s1 = inlined_call_operand.vmem [shape: f32[3,16,128], index: 1, kind: input, shape index: {}]
  %s2 = inlined_call_operand.vmem [shape: f32[3,16,16], index: 2, kind: input, shape index: {}]
  %s3 = inlined_call_operand.hbm [shape: f32[10,128,128], index: 3, kind: input, shape index: {}]
  %s4 = inlined_call_operand.vmem [shape: f32[10,1,128], index: 4, kind: input, shape index: {}]
  %s5 = inlined_call_operand.vmem [shape: f32[16,128], index: 5, kind: output, shape index: {0}]
  %s6 = inlined_call_operand.hbm [shape: f32[3,16,128], index: 6, kind: output, shape index: {1}]
  %7 = xla_tuple %s5, %s6
  %s8 = sld [smem:[#allocation0]]
  $region42: #{neuronal_cell_backward.1} parent=0
    _
  %s10 = ssub.s32 1, %s8
  %s11 = scalar_select 0, %s10, %s8
  $region1: #{neuronal_cell_backward.1} parent=0
    #allocation2 [shape = 'u8[655360]{0}', space=vmem, size = 0xa0000, scoped, tag = 'input window, operand 3, single buffered']
    #allocation3 [shape = 's32[1]{0}', space=sflag, size = 0x4, scoped, tag = 'scoped memory for neuronal_cell_backward.1']
    #allocation4 [shape = 's32[1]{0}', space=sflag, size = 0x4, scoped, tag = 'scoped memory for neuronal_cell_backward.1']
    #allocation5 [shape = 'u8[24576]{0}', space=vmem, size = 0x6000, scoped, tag = 'output window, operand 1, single buffered']
    %12 = vsyncpa [#allocation3], 0
    %13 = vsyncpa [#allocation4], 0
    // Predicated region
    $region2: #{neuronal_cell_backward.1} parent=1 // pred_check
      _
    $region3: #{neuronal_cell_backward.1} parent=1 // pred_check_branch
      %15 = sbr.rel (0) target = $region5
    $region4: #{neuronal_cell_backward.1} parent=1 // pred_region
      _
    $region5: #{neuronal_cell_backward.1} parent=1 // pred_fallthru
      _
    // Predicated region
    $region6: #{neuronal_cell_backward.1} parent=1 // pred_check
      _
    $region7: #{neuronal_cell_backward.1} parent=1 // pred_check_branch
      %17 = sbr.rel (0) target = $region9
    $region8: #{neuronal_cell_backward.1} parent=1 // pred_region
      _
    $region9: #{neuronal_cell_backward.1} parent=1 // pred_fallthru
      _
    // Predicated region
    $region10: #{neuronal_cell_backward.1} parent=1 // pred_check
      _
    $region11: #{neuronal_cell_backward.1} parent=1 // pred_check_branch
      %19 = sbr.rel (0) target = $region13
    $region12: #{neuronal_cell_backward.1} parent=1 // pred_region
      _
    $region13: #{neuronal_cell_backward.1} parent=1 // pred_fallthru
      _
    // Predicated region
    $region14: #{neuronal_cell_backward.1} parent=1 // pred_check
      _
    $region15: #{neuronal_cell_backward.1} parent=1 // pred_check_branch
      %21 = sbr.rel (0) target = $region17
    $region16: #{neuronal_cell_backward.1} parent=1 // pred_region
      %23 = vsyncadd [#allocation3], 0
      %s24 = sshll.u32 %s3, 4
      %s25 = int_to_ptr.hbm [resolvable:$true] %s24
      %s26 = sshll.u32 [#allocation2], 4
      %s27 = int_to_ptr.vmem [resolvable:$true] %s26
      %32 = dma.hbm_to_vmem [thread:$0]  %s25, 20480, %s27, [#allocation3], 128, 128, 8
    $region17: #{neuronal_cell_backward.1} parent=1 // pred_fallthru
      _
    // Predicated region
    $region18: #{neuronal_cell_backward.1} parent=1 // pred_check
      _
    $region19: #{neuronal_cell_backward.1} parent=1 // pred_check_branch
      %34 = sbr.rel (0) target = $region21
    $region20: #{neuronal_cell_backward.1} parent=1 // pred_region
      _
    $region21: #{neuronal_cell_backward.1} parent=1 // pred_fallthru
      _
    // Predicated region
    $region22: #{neuronal_cell_backward.1} parent=1 // pred_check
      _
    $region23: #{neuronal_cell_backward.1} parent=1 // pred_check_branch
      %36 = sbr.rel (0) target = $region25
    $region24: #{neuronal_cell_backward.1} parent=1 // pred_region
      %38 = dma.done [#allocation3], 20480
    $region25: #{neuronal_cell_backward.1} parent=1 // pred_fallthru
      _
    %v39 = vld [vmem:[%s2] sm:$0xff]
    %v40 = vld [vmem:[%s2 + $0x8] sm:$0xff]
    %s41 = scalar_lea.vmem %s2, 16
    %v42 = vld [vmem:[%s41] sm:$0xff]
    %v43 = vld [vmem:[%s41 + $0x8] sm:$0xff]
    %s44 = scalar_lea.vmem %s2, 32
    %v45 = vld [vmem:[%s44] sm:$0xff]
    %v46 = vld [vmem:[%s44 + $0x8] sm:$0xff]
    %v47 = vld [vmem:[#allocation2] sm:$0xff]
    %v48 = vld [vmem:[#allocation2 + $0x8] sm:$0xff]
    %v49 = vld [vmem:[#allocation2 + $0x10] sm:$0xff]
    %v50 = vld [vmem:[#allocation2 + $0x18] sm:$0xff]
    %v51 = vld [vmem:[#allocation2 + $0x20] sm:$0xff]
    %v52 = vld [vmem:[#allocation2 + $0x28] sm:$0xff]
    %v53 = vld [vmem:[#allocation2 + $0x30] sm:$0xff]
    %v54 = vld [vmem:[#allocation2 + $0x38] sm:$0xff]
    %v55 = vld [vmem:[#allocation2 + $0x40] sm:$0xff]
    %v56 = vld [vmem:[#allocation2 + $0x48] sm:$0xff]
    %v57 = vld [vmem:[#allocation2 + $0x50] sm:$0xff]
    %v58 = vld [vmem:[#allocation2 + $0x58] sm:$0xff]
    %v59 = vld [vmem:[#allocation2 + $0x60] sm:$0xff]
    %v60 = vld [vmem:[#allocation2 + $0x68] sm:$0xff]
    %v61 = vld [vmem:[#allocation2 + $0x70] sm:$0xff]
    %v62 = vld [vmem:[#allocation2 + $0x78] sm:$0xff]
    %v63 = vld [vmem:[%s0] sm:$0xff]
    %v64 = vld [vmem:[%s0 + $0x8] sm:$0xff]
    %v65 = vld [vmem:[%s1] sm:$0xff]
    %v66 = vld [vmem:[%s1 + $0x8] sm:$0xff]
    %v67 = vadd.f32 %v63, %v65
    %v68 = vadd.f32 %v64, %v66
    %v69 = vmul.f32 %v67, 0.5
    %v70 = vmul.f32 %v68, 0.5
    %vm71 = vcmp.ge.f32.partialorder %v69, 0.5
    %vm72 = vcmp.ge.f32.partialorder %v70, 0.5
    %v73 = vsel %vm71, 1, 0
    %v74 = vsel %vm72, 1, 0
    %v75 = vcvt.s32.f32 %v73
    %v76 = vcvt.s32.f32 %v74
    %vm77 = vcmask 130048
    %v79 = vsel %vm77, %v39, 0
    %v82 = vsel %vm77, %v40, 0
    %84 = vmatpush.msra.mxu0 0.0
    %85 = vmatpush.msra.mxu0 0.0
    %86 = vmatpush.msra.mxu0 0.0
    %87 = vmatpush.msra.mxu0 0.0
    %88 = vmatpush.msra.mxu0 0.0
    %89 = vmatpush.msra.mxu0 0.0
    %90 = vmatpush.msra.mxu0 0.0
    %91 = vmatpush.msra.mxu0 0.0
    %92 = vmatpush.msra.mxu0 0.0
    %93 = vmatpush.msra.mxu0 0.0
    %94 = vmatpush.msra.mxu0 0.0
    %95 = vmatpush.msra.mxu0 0.0
    %96 = vmatpush.msra.mxu0 0.0
    %97 = vmatpush.msra.mxu0 0.0
    %98 = vmatpush.msra.mxu0 %v76
    %99 = vmatpush.msra.mxu0 %v75
    %100 = vmatmul.f32.gmra.mxu0 %v79
    %v101 = vpop.f32.mrf.mxu0
    %v102 = vadd.f32 0.0, %v101
    %103 = vmatmul.f32.gmra.mxu0 %v82
    %v104 = vpop.f32.mrf.mxu0
    %v105 = vadd.f32 0.0, %v104
    %106 = vdwg.mxu0
    %s107 = scalar_lea.vmem [#allocation2], 128
    %v108 = vld [vmem:[%s107] sm:$0xff]
    %v109 = vld [vmem:[%s107 + $0x8] sm:$0xff]
    %v110 = vld [vmem:[%s107 + $0x10] sm:$0xff]
    %v111 = vld [vmem:[%s107 + $0x18] sm:$0xff]
    %v112 = vld [vmem:[%s107 + $0x20] sm:$0xff]
    %v113 = vld [vmem:[%s107 + $0x28] sm:$0xff]
    %v114 = vld [vmem:[%s107 + $0x30] sm:$0xff]
    %v115 = vld [vmem:[%s107 + $0x38] sm:$0xff]
    %v116 = vld [vmem:[%s107 + $0x40] sm:$0xff]
    %v117 = vld [vmem:[%s107 + $0x48] sm:$0xff]
    %v118 = vld [vmem:[%s107 + $0x50] sm:$0xff]
    %v119 = vld [vmem:[%s107 + $0x58] sm:$0xff]
    %v120 = vld [vmem:[%s107 + $0x60] sm:$0xff]
    %v121 = vld [vmem:[%s107 + $0x68] sm:$0xff]
    %v122 = vld [vmem:[%s107 + $0x70] sm:$0xff]
    %v123 = vld [vmem:[%s107 + $0x78] sm:$0xff]
    %s124 = scalar_lea.vmem [#allocation2], 256
    %v125 = vld [vmem:[%s124] sm:$0xff]
    %v126 = vld [vmem:[%s124 + $0x8] sm:$0xff]
    %v127 = vld [vmem:[%s124 + $0x10] sm:$0xff]
    %v128 = vld [vmem:[%s124 + $0x18] sm:$0xff]
    %v129 = vld [vmem:[%s124 + $0x20] sm:$0xff]
    %v130 = vld [vmem:[%s124 + $0x28] sm:$0xff]
    %v131 = vld [vmem:[%s124 + $0x30] sm:$0xff]
    %v132 = vld [vmem:[%s124 + $0x38] sm:$0xff]
    %v133 = vld [vmem:[%s124 + $0x40] sm:$0xff]
    %v134 = vld [vmem:[%s124 + $0x48] sm:$0xff]
    %v135 = vld [vmem:[%s124 + $0x50] sm:$0xff]
    %v136 = vld [vmem:[%s124 + $0x58] sm:$0xff]
    %v137 = vld [vmem:[%s124 + $0x60] sm:$0xff]
    %v138 = vld [vmem:[%s124 + $0x68] sm:$0xff]
    %v139 = vld [vmem:[%s124 + $0x70] sm:$0xff]
    %v140 = vld [vmem:[%s124 + $0x78] sm:$0xff]
    %141 = vmatpush.msra.mxu0 %v140
    %142 = vmatpush.msra.mxu0 %v139
    %143 = vmatpush.msra.mxu0 %v138
    %144 = vmatpush.msra.mxu0 %v137
    %145 = vmatpush.msra.mxu0 %v136
    %146 = vmatpush.msra.mxu0 %v135
    %147 = vmatpush.msra.mxu0 %v134
    %148 = vmatpush.msra.mxu0 %v133
    %149 = vmatpush.msra.mxu0 %v132
    %150 = vmatpush.msra.mxu0 %v131
    %151 = vmatpush.msra.mxu0 %v130
    %152 = vmatpush.msra.mxu0 %v129
    %153 = vmatpush.msra.mxu0 %v128
    %154 = vmatpush.msra.mxu0 %v127
    %155 = vmatpush.msra.mxu0 %v126
    %156 = vmatpush.msra.mxu0 %v125
    %157 = vmatmul.f32.gmra.mxu0 %v75
    %v158 = vpop.f32.mrf.mxu0
    %v159 = vadd.f32 0.0, %v158
    %160 = vmatmul.f32.gmra.mxu0 %v76
    %v161 = vpop.f32.mrf.mxu0
    %v162 = vadd.f32 0.0, %v161
    %163 = vdwg.mxu0
    %164 = vmatpush.msra.mxu0 %v123
    %165 = vmatpush.msra.mxu0 %v122
    %166 = vmatpush.msra.mxu0 %v121
    %167 = vmatpush.msra.mxu0 %v120
    %168 = vmatpush.msra.mxu0 %v119
    %169 = vmatpush.msra.mxu0 %v118
    %170 = vmatpush.msra.mxu0 %v117
    %171 = vmatpush.msra.mxu0 %v116
    %172 = vmatpush.msra.mxu0 %v115
    %173 = vmatpush.msra.mxu0 %v114
    %174 = vmatpush.msra.mxu0 %v113
    %175 = vmatpush.msra.mxu0 %v112
    %176 = vmatpush.msra.mxu0 %v111
    %177 = vmatpush.msra.mxu0 %v110
    %178 = vmatpush.msra.mxu0 %v109
    %179 = vmatpush.msra.mxu0 %v108
    %180 = vmatmul.f32.gmra.mxu0 %v102
    %v181 = vpop.f32.mrf.mxu0
    %v182 = vadd.f32 %v159, %v181
    %183 = vmatmul.f32.gmra.mxu0 %v105
    %v184 = vpop.f32.mrf.mxu0
    %v185 = vadd.f32 %v162, %v184
    %186 = vdwg.mxu0
    %v188 = vsel %vm77, %v42, 0
    %v191 = vsel %vm77, %v43, 0
    %193 = vmatpush.msra.mxu0 0.0
    %194 = vmatpush.msra.mxu0 0.0
    %195 = vmatpush.msra.mxu0 0.0
    %196 = vmatpush.msra.mxu0 0.0
    %197 = vmatpush.msra.mxu0 0.0
    %198 = vmatpush.msra.mxu0 0.0
    %199 = vmatpush.msra.mxu0 0.0
    %200 = vmatpush.msra.mxu0 0.0
    %201 = vmatpush.msra.mxu0 0.0
    %202 = vmatpush.msra.mxu0 0.0
    %203 = vmatpush.msra.mxu0 0.0
    %204 = vmatpush.msra.mxu0 0.0
    %205 = vmatpush.msra.mxu0 0.0
    %206 = vmatpush.msra.mxu0 0.0
    %207 = vmatpush.msra.mxu0 %v76
    %208 = vmatpush.msra.mxu0 %v75
    %209 = vmatmul.f32.gmra.mxu0 %v188
    %v210 = vpop.f32.mrf.mxu0
    %v211 = vadd.f32 0.0, %v210
    %212 = vmatmul.f32.gmra.mxu0 %v191
    %v213 = vpop.f32.mrf.mxu0
    %v214 = vadd.f32 0.0, %v213
    %215 = vdwg.mxu0
    %s216 = scalar_lea.vmem [#allocation2], 384
    %v217 = vld [vmem:[%s216] sm:$0xff]
    %v218 = vld [vmem:[%s216 + $0x8] sm:$0xff]
    %v219 = vld [vmem:[%s216 + $0x10] sm:$0xff]
    %v220 = vld [vmem:[%s216 + $0x18] sm:$0xff]
    %v221 = vld [vmem:[%s216 + $0x20] sm:$0xff]
    %v222 = vld [vmem:[%s216 + $0x28] sm:$0xff]
    %v223 = vld [vmem:[%s216 + $0x30] sm:$0xff]
    %v224 = vld [vmem:[%s216 + $0x38] sm:$0xff]
    %v225 = vld [vmem:[%s216 + $0x40] sm:$0xff]
    %v226 = vld [vmem:[%s216 + $0x48] sm:$0xff]
    %v227 = vld [vmem:[%s216 + $0x50] sm:$0xff]
    %v228 = vld [vmem:[%s216 + $0x58] sm:$0xff]
    %v229 = vld [vmem:[%s216 + $0x60] sm:$0xff]
    %v230 = vld [vmem:[%s216 + $0x68] sm:$0xff]
    %v231 = vld [vmem:[%s216 + $0x70] sm:$0xff]
    %v232 = vld [vmem:[%s216 + $0x78] sm:$0xff]
    %233 = vmatpush.msra.mxu0 %v232
    %234 = vmatpush.msra.mxu0 %v231
    %235 = vmatpush.msra.mxu0 %v230
    %236 = vmatpush.msra.mxu0 %v229
    %237 = vmatpush.msra.mxu0 %v228
    %238 = vmatpush.msra.mxu0 %v227
    %239 = vmatpush.msra.mxu0 %v226
    %240 = vmatpush.msra.mxu0 %v225
    %241 = vmatpush.msra.mxu0 %v224
    %242 = vmatpush.msra.mxu0 %v223
    %243 = vmatpush.msra.mxu0 %v222
    %244 = vmatpush.msra.mxu0 %v221
    %245 = vmatpush.msra.mxu0 %v220
    %246 = vmatpush.msra.mxu0 %v219
    %247 = vmatpush.msra.mxu0 %v218
    %248 = vmatpush.msra.mxu0 %v217
    %249 = vmatmul.f32.gmra.mxu0 %v211
    %v250 = vpop.f32.mrf.mxu0
    %v251 = vadd.f32 0.0, %v250
    %252 = vmatmul.f32.gmra.mxu0 %v214
    %v253 = vpop.f32.mrf.mxu0
    %v254 = vadd.f32 0.0, %v253
    %255 = vdwg.mxu0
    %v256 = vadd.f32 %v182, %v251
    %v257 = vadd.f32 %v185, %v254
    %v258 = vld [vmem:[%s4] sm:$0x1]
    %v260 = vperm.slane %v258, 0
    %v262 = vmul.f32 %v256, %v260
    %v263 = vmul.f32 %v257, %v260
    %s264 = scalar_lea.vmem %s4, 1
    %v265 = vld [vmem:[%s264] sm:$0x1]
    %v267 = vperm.slane %v265, 0
    %v269 = vadd.f32 %v262, %v267
    %v270 = vadd.f32 %v263, %v267
    %s271 = scalar_lea.vmem %s1, 16
    %v272 = vld [vmem:[%s271] sm:$0xff]
    %v273 = vld [vmem:[%s271 + $0x8] sm:$0xff]
    %v274 = vadd.f32 %v269, %v272
    %v275 = vadd.f32 %v270, %v273
    %v276 = vmul.f32 %v274, 0.5
    %v277 = vmul.f32 %v275, 0.5
    %vm278 = vcmp.ge.f32.partialorder %v276, 0.5
    %vm279 = vcmp.ge.f32.partialorder %v277, 0.5
    %v280 = vsel %vm278, 1, 0
    %v281 = vsel %vm279, 1, 0
    %v282 = vcvt.s32.f32 %v280
    %v283 = vcvt.s32.f32 %v281
    %s284 = scalar_lea.vmem [#allocation2], 512
    %v285 = vld [vmem:[%s284] sm:$0xff]
    %v286 = vld [vmem:[%s284 + $0x8] sm:$0xff]
    %v287 = vld [vmem:[%s284 + $0x10] sm:$0xff]
    %v288 = vld [vmem:[%s284 + $0x18] sm:$0xff]
    %v289 = vld [vmem:[%s284 + $0x20] sm:$0xff]
    %v290 = vld [vmem:[%s284 + $0x28] sm:$0xff]
    %v291 = vld [vmem:[%s284 + $0x30] sm:$0xff]
    %v292 = vld [vmem:[%s284 + $0x38] sm:$0xff]
    %v293 = vld [vmem:[%s284 + $0x40] sm:$0xff]
    %v294 = vld [vmem:[%s284 + $0x48] sm:$0xff]
    %v295 = vld [vmem:[%s284 + $0x50] sm:$0xff]
    %v296 = vld [vmem:[%s284 + $0x58] sm:$0xff]
    %v297 = vld [vmem:[%s284 + $0x60] sm:$0xff]
    %v298 = vld [vmem:[%s284 + $0x68] sm:$0xff]
    %v299 = vld [vmem:[%s284 + $0x70] sm:$0xff]
    %v300 = vld [vmem:[%s284 + $0x78] sm:$0xff]
    %301 = vmatpush.msra.mxu0 %v300
    %302 = vmatpush.msra.mxu0 %v299
    %303 = vmatpush.msra.mxu0 %v298
    %304 = vmatpush.msra.mxu0 %v297
    %305 = vmatpush.msra.mxu0 %v296
    %306 = vmatpush.msra.mxu0 %v295
    %307 = vmatpush.msra.mxu0 %v294
    %308 = vmatpush.msra.mxu0 %v293
    %309 = vmatpush.msra.mxu0 %v292
    %310 = vmatpush.msra.mxu0 %v291
    %311 = vmatpush.msra.mxu0 %v290
    %312 = vmatpush.msra.mxu0 %v289
    %313 = vmatpush.msra.mxu0 %v288
    %314 = vmatpush.msra.mxu0 %v287
    %315 = vmatpush.msra.mxu0 %v286
    %316 = vmatpush.msra.mxu0 %v285
    %317 = vmatmul.f32.gmra.mxu0 %v282
    %v318 = vpop.f32.mrf.mxu0
    %v319 = vadd.f32 0.0, %v318
    %320 = vmatmul.f32.gmra.mxu0 %v283
    %v321 = vpop.f32.mrf.mxu0
    %v322 = vadd.f32 0.0, %v321
    %323 = vdwg.mxu0
    %s324 = scalar_lea.vmem %s4, 2
    %v325 = vld [vmem:[%s324] sm:$0x1]
    %v327 = vperm.slane %v325, 0
    %v329 = vmul.f32 %v319, %v327
    %v330 = vmul.f32 %v322, %v327
    %s331 = scalar_lea.vmem %s4, 3
    %v332 = vld [vmem:[%s331] sm:$0x1]
    %v334 = vperm.slane %v332, 0
    %v336 = vadd.f32 %v329, %v334
    %v337 = vadd.f32 %v330, %v334
    %v338 = vadd.f32 %v67, %v336
    %v339 = vadd.f32 %v68, %v337
    %s340 = scalar_lea.vmem %s1, 32
    %v341 = vld [vmem:[%s340] sm:$0xff]
    %v342 = vld [vmem:[%s340 + $0x8] sm:$0xff]
    %v343 = vadd.f32 %v338, %v341
    %v344 = vadd.f32 %v339, %v342
    %v346 = vsel %vm77, %v45, 0
    %v349 = vsel %vm77, %v46, 0
    %351 = vmatpush.msra.mxu0 0.0
    %352 = vmatpush.msra.mxu0 0.0
    %353 = vmatpush.msra.mxu0 0.0
    %354 = vmatpush.msra.mxu0 0.0
    %355 = vmatpush.msra.mxu0 0.0
    %356 = vmatpush.msra.mxu0 0.0
    %357 = vmatpush.msra.mxu0 0.0
    %358 = vmatpush.msra.mxu0 0.0
    %359 = vmatpush.msra.mxu0 0.0
    %360 = vmatpush.msra.mxu0 0.0
    %361 = vmatpush.msra.mxu0 0.0
    %362 = vmatpush.msra.mxu0 0.0
    %363 = vmatpush.msra.mxu0 0.0
    %364 = vmatpush.msra.mxu0 0.0
    %365 = vmatpush.msra.mxu0 %v68
    %366 = vmatpush.msra.mxu0 %v67
    %367 = vmatmul.f32.gmra.mxu0 %v346
    %v368 = vpop.f32.mrf.mxu0
    %v369 = vadd.f32 0.0, %v368
    %370 = vmatmul.f32.gmra.mxu0 %v349
    %v371 = vpop.f32.mrf.mxu0
    %v372 = vadd.f32 0.0, %v371
    %373 = vdwg.mxu0
    %374 = vmatpush.msra.mxu0 %v62
    %375 = vmatpush.msra.mxu0 %v61
    %376 = vmatpush.msra.mxu0 %v60
    %377 = vmatpush.msra.mxu0 %v59
    %378 = vmatpush.msra.mxu0 %v58
    %379 = vmatpush.msra.mxu0 %v57
    %380 = vmatpush.msra.mxu0 %v56
    %381 = vmatpush.msra.mxu0 %v55
    %382 = vmatpush.msra.mxu0 %v54
    %383 = vmatpush.msra.mxu0 %v53
    %384 = vmatpush.msra.mxu0 %v52
    %385 = vmatpush.msra.mxu0 %v51
    %386 = vmatpush.msra.mxu0 %v50
    %387 = vmatpush.msra.mxu0 %v49
    %388 = vmatpush.msra.mxu0 %v48
    %389 = vmatpush.msra.mxu0 %v47
    %390 = vmatmul.f32.gmra.mxu0 %v369
    %v391 = vpop.f32.mrf.mxu0
    %v392 = vadd.f32 0.0, %v391
    %393 = vmatmul.f32.gmra.mxu0 %v372
    %v394 = vpop.f32.mrf.mxu0
    %v395 = vadd.f32 0.0, %v394
    %396 = vdwg.mxu0
    %v397 = vmul.f32 %v392, 0.11111111
    %v398 = vmul.f32 %v395, 0.11111111
    %v399 = vmul.f32 %v343, 0.5
    %v400 = vmul.f32 %v344, 0.5
    %vm401 = vcmp.ge.f32.partialorder %v399, 0.5
    %vm402 = vcmp.ge.f32.partialorder %v400, 0.5
    %v403 = vsel %vm401, 1, 0
    %v404 = vsel %vm402, 1, 0
    %v405 = vcvt.s32.f32 %v403
    %v406 = vcvt.s32.f32 %v404
    %s407 = scalar_lea.vmem [#allocation2], 640
    %v408 = vld [vmem:[%s407] sm:$0xff]
    %v409 = vld [vmem:[%s407 + $0x8] sm:$0xff]
    %v410 = vld [vmem:[%s407 + $0x10] sm:$0xff]
    %v411 = vld [vmem:[%s407 + $0x18] sm:$0xff]
    %v412 = vld [vmem:[%s407 + $0x20] sm:$0xff]
    %v413 = vld [vmem:[%s407 + $0x28] sm:$0xff]
    %v414 = vld [vmem:[%s407 + $0x30] sm:$0xff]
    %v415 = vld [vmem:[%s407 + $0x38] sm:$0xff]
    %v416 = vld [vmem:[%s407 + $0x40] sm:$0xff]
    %v417 = vld [vmem:[%s407 + $0x48] sm:$0xff]
    %v418 = vld [vmem:[%s407 + $0x50] sm:$0xff]
    %v419 = vld [vmem:[%s407 + $0x58] sm:$0xff]
    %v420 = vld [vmem:[%s407 + $0x60] sm:$0xff]
    %v421 = vld [vmem:[%s407 + $0x68] sm:$0xff]
    %v422 = vld [vmem:[%s407 + $0x70] sm:$0xff]
    %v423 = vld [vmem:[%s407 + $0x78] sm:$0xff]
    %424 = vmatpush.msra.mxu0 %v423
    %425 = vmatpush.msra.mxu0 %v422
    %426 = vmatpush.msra.mxu0 %v421
    %427 = vmatpush.msra.mxu0 %v420
    %428 = vmatpush.msra.mxu0 %v419
    %429 = vmatpush.msra.mxu0 %v418
    %430 = vmatpush.msra.mxu0 %v417
    %431 = vmatpush.msra.mxu0 %v416
    %432 = vmatpush.msra.mxu0 %v415
    %433 = vmatpush.msra.mxu0 %v414
    %434 = vmatpush.msra.mxu0 %v413
    %435 = vmatpush.msra.mxu0 %v412
    %436 = vmatpush.msra.mxu0 %v411
    %437 = vmatpush.msra.mxu0 %v410
    %438 = vmatpush.msra.mxu0 %v409
    %439 = vmatpush.msra.mxu0 %v408
    %440 = vmatmul.f32.gmra.mxu0 %v405
    %v441 = vpop.f32.mrf.mxu0
    %v442 = vadd.f32 0.0, %v441
    %443 = vmatmul.f32.gmra.mxu0 %v406
    %v444 = vpop.f32.mrf.mxu0
    %v445 = vadd.f32 0.0, %v444
    %446 = vdwg.mxu0
    %s447 = scalar_lea.vmem %s4, 4
    %v448 = vld [vmem:[%s447] sm:$0x1]
    %v450 = vperm.slane %v448, 0
    %v452 = vmul.f32 %v442, %v450
    %v453 = vmul.f32 %v445, %v450
    %s454 = scalar_lea.vmem %s4, 5
    %v455 = vld [vmem:[%s454] sm:$0x1]
    %v457 = vperm.slane %v455, 0
    %v459 = vadd.f32 %v452, %v457
    %v460 = vadd.f32 %v453, %v457
    %v461 = vadd.f32 %v397, %v459
    %v462 = vadd.f32 %v398, %v460
    %v463 = vmul.f32 %v461, 0.5
    %v464 = vmul.f32 %v462, 0.5
    %vm465 = vcmp.ge.f32.partialorder %v463, 0.5
    %vm466 = vcmp.ge.f32.partialorder %v464, 0.5
    %v467 = vsel %vm465, 1, 0
    %v468 = vsel %vm466, 1, 0
    %v469 = vcvt.s32.f32 %v467
    %v470 = vcvt.s32.f32 %v468
    %s471 = scalar_lea.vmem [#allocation2], 768
    %v472 = vld [vmem:[%s471] sm:$0xff]
    %v473 = vld [vmem:[%s471 + $0x8] sm:$0xff]
    %v474 = vld [vmem:[%s471 + $0x10] sm:$0xff]
    %v475 = vld [vmem:[%s471 + $0x18] sm:$0xff]
    %v476 = vld [vmem:[%s471 + $0x20] sm:$0xff]
    %v477 = vld [vmem:[%s471 + $0x28] sm:$0xff]
    %v478 = vld [vmem:[%s471 + $0x30] sm:$0xff]
    %v479 = vld [vmem:[%s471 + $0x38] sm:$0xff]
    %v480 = vld [vmem:[%s471 + $0x40] sm:$0xff]
    %v481 = vld [vmem:[%s471 + $0x48] sm:$0xff]
    %v482 = vld [vmem:[%s471 + $0x50] sm:$0xff]
    %v483 = vld [vmem:[%s471 + $0x58] sm:$0xff]
    %v484 = vld [vmem:[%s471 + $0x60] sm:$0xff]
    %v485 = vld [vmem:[%s471 + $0x68] sm:$0xff]
    %v486 = vld [vmem:[%s471 + $0x70] sm:$0xff]
    %v487 = vld [vmem:[%s471 + $0x78] sm:$0xff]
    %488 = vmatpush.msra.mxu0 %v487
    %489 = vmatpush.msra.mxu0 %v486
    %490 = vmatpush.msra.mxu0 %v485
    %491 = vmatpush.msra.mxu0 %v484
    %492 = vmatpush.msra.mxu0 %v483
    %493 = vmatpush.msra.mxu0 %v482
    %494 = vmatpush.msra.mxu0 %v481
    %495 = vmatpush.msra.mxu0 %v480
    %496 = vmatpush.msra.mxu0 %v479
    %497 = vmatpush.msra.mxu0 %v478
    %498 = vmatpush.msra.mxu0 %v477
    %499 = vmatpush.msra.mxu0 %v476
    %500 = vmatpush.msra.mxu0 %v475
    %501 = vmatpush.msra.mxu0 %v474
    %502 = vmatpush.msra.mxu0 %v473
    %503 = vmatpush.msra.mxu0 %v472
    %504 = vmatmul.f32.gmra.mxu0 %v469
    %v505 = vpop.f32.mrf.mxu0
    %v506 = vadd.f32 0.0, %v505
    %507 = vmatmul.f32.gmra.mxu0 %v470
    %v508 = vpop.f32.mrf.mxu0
    %v509 = vadd.f32 0.0, %v508
    %510 = vdwg.mxu0
    %s511 = scalar_lea.vmem %s4, 6
    %v512 = vld [vmem:[%s511] sm:$0x1]
    %v514 = vperm.slane %v512, 0
    %v516 = vmul.f32 %v506, %v514
    %v517 = vmul.f32 %v509, %v514
    %s518 = scalar_lea.vmem %s4, 7
    %v519 = vld [vmem:[%s518] sm:$0x1]
    %v521 = vperm.slane %v519, 0
    %v523 = vadd.f32 %v516, %v521
    %v524 = vadd.f32 %v517, %v521
    %v525 = vadd.f32 %v274, %v523
    %v526 = vadd.f32 %v275, %v524
    %527 = vmatpush.msra.mxu0 0.0
    %528 = vmatpush.msra.mxu0 0.0
    %529 = vmatpush.msra.mxu0 0.0
    %530 = vmatpush.msra.mxu0 0.0
    %531 = vmatpush.msra.mxu0 0.0
    %532 = vmatpush.msra.mxu0 0.0
    %533 = vmatpush.msra.mxu0 0.0
    %534 = vmatpush.msra.mxu0 0.0
    %535 = vmatpush.msra.mxu0 0.0
    %536 = vmatpush.msra.mxu0 0.0
    %537 = vmatpush.msra.mxu0 0.0
    %538 = vmatpush.msra.mxu0 0.0
    %539 = vmatpush.msra.mxu0 0.0
    %540 = vmatpush.msra.mxu0 0.0
    %541 = vmatpush.msra.mxu0 %v344
    %542 = vmatpush.msra.mxu0 %v343
    %543 = vmatmul.f32.gmra.mxu0 %v346
    %v544 = vpop.f32.mrf.mxu0
    %v545 = vadd.f32 0.0, %v544
    %546 = vmatmul.f32.gmra.mxu0 %v349
    %v547 = vpop.f32.mrf.mxu0
    %v548 = vadd.f32 0.0, %v547
    %549 = vdwg.mxu0
    %550 = vmatpush.msra.mxu0 %v62
    %551 = vmatpush.msra.mxu0 %v61
    %552 = vmatpush.msra.mxu0 %v60
    %553 = vmatpush.msra.mxu0 %v59
    %554 = vmatpush.msra.mxu0 %v58
    %555 = vmatpush.msra.mxu0 %v57
    %556 = vmatpush.msra.mxu0 %v56
    %557 = vmatpush.msra.mxu0 %v55
    %558 = vmatpush.msra.mxu0 %v54
    %559 = vmatpush.msra.mxu0 %v53
    %560 = vmatpush.msra.mxu0 %v52
    %561 = vmatpush.msra.mxu0 %v51
    %562 = vmatpush.msra.mxu0 %v50
    %563 = vmatpush.msra.mxu0 %v49
    %564 = vmatpush.msra.mxu0 %v48
    %565 = vmatpush.msra.mxu0 %v47
    %566 = vmatmul.f32.gmra.mxu0 %v545
    %v567 = vpop.f32.mrf.mxu0
    %v568 = vadd.f32 0.0, %v567
    %569 = vmatmul.f32.gmra.mxu0 %v548
    %v570 = vpop.f32.mrf.mxu0
    %v571 = vadd.f32 0.0, %v570
    %572 = vdwg.mxu0
    %v573 = vmul.f32 %v568, 0.11111111
    %v574 = vmul.f32 %v571, 0.11111111
    %v575 = vadd.f32 %v573, %v461
    %v576 = vadd.f32 %v574, %v462
    %577 = vmatpush.msra.mxu0 0.0
    %578 = vmatpush.msra.mxu0 0.0
    %579 = vmatpush.msra.mxu0 0.0
    %580 = vmatpush.msra.mxu0 0.0
    %581 = vmatpush.msra.mxu0 0.0
    %582 = vmatpush.msra.mxu0 0.0
    %583 = vmatpush.msra.mxu0 0.0
    %584 = vmatpush.msra.mxu0 0.0
    %585 = vmatpush.msra.mxu0 0.0
    %586 = vmatpush.msra.mxu0 0.0
    %587 = vmatpush.msra.mxu0 0.0
    %588 = vmatpush.msra.mxu0 0.0
    %589 = vmatpush.msra.mxu0 0.0
    %590 = vmatpush.msra.mxu0 0.0
    %591 = vmatpush.msra.mxu0 %v470
    %592 = vmatpush.msra.mxu0 %v469
    %593 = vmatmul.f32.gmra.mxu0 %v79
    %v594 = vpop.f32.mrf.mxu0
    %v595 = vadd.f32 0.0, %v594
    %596 = vmatmul.f32.gmra.mxu0 %v82
    %v597 = vpop.f32.mrf.mxu0
    %v598 = vadd.f32 0.0, %v597
    %599 = vdwg.mxu0
    %s600 = scalar_lea.vmem [#allocation2], 896
    %v601 = vld [vmem:[%s600] sm:$0xff]
    %v602 = vld [vmem:[%s600 + $0x8] sm:$0xff]
    %v603 = vld [vmem:[%s600 + $0x10] sm:$0xff]
    %v604 = vld [vmem:[%s600 + $0x18] sm:$0xff]
    %v605 = vld [vmem:[%s600 + $0x20] sm:$0xff]
    %v606 = vld [vmem:[%s600 + $0x28] sm:$0xff]
    %v607 = vld [vmem:[%s600 + $0x30] sm:$0xff]
    %v608 = vld [vmem:[%s600 + $0x38] sm:$0xff]
    %v609 = vld [vmem:[%s600 + $0x40] sm:$0xff]
    %v610 = vld [vmem:[%s600 + $0x48] sm:$0xff]
    %v611 = vld [vmem:[%s600 + $0x50] sm:$0xff]
    %v612 = vld [vmem:[%s600 + $0x58] sm:$0xff]
    %v613 = vld [vmem:[%s600 + $0x60] sm:$0xff]
    %v614 = vld [vmem:[%s600 + $0x68] sm:$0xff]
    %v615 = vld [vmem:[%s600 + $0x70] sm:$0xff]
    %v616 = vld [vmem:[%s600 + $0x78] sm:$0xff]
    %s617 = scalar_lea.vmem [#allocation2], 1024
    %v618 = vld [vmem:[%s617] sm:$0xff]
    %v619 = vld [vmem:[%s617 + $0x8] sm:$0xff]
    %v620 = vld [vmem:[%s617 + $0x10] sm:$0xff]
    %v621 = vld [vmem:[%s617 + $0x18] sm:$0xff]
    %v622 = vld [vmem:[%s617 + $0x20] sm:$0xff]
    %v623 = vld [vmem:[%s617 + $0x28] sm:$0xff]
    %v624 = vld [vmem:[%s617 + $0x30] sm:$0xff]
    %v625 = vld [vmem:[%s617 + $0x38] sm:$0xff]
    %v626 = vld [vmem:[%s617 + $0x40] sm:$0xff]
    %v627 = vld [vmem:[%s617 + $0x48] sm:$0xff]
    %v628 = vld [vmem:[%s617 + $0x50] sm:$0xff]
    %v629 = vld [vmem:[%s617 + $0x58] sm:$0xff]
    %v630 = vld [vmem:[%s617 + $0x60] sm:$0xff]
    %v631 = vld [vmem:[%s617 + $0x68] sm:$0xff]
    %v632 = vld [vmem:[%s617 + $0x70] sm:$0xff]
    %v633 = vld [vmem:[%s617 + $0x78] sm:$0xff]
    %634 = vmatpush.msra.mxu0 %v633
    %635 = vmatpush.msra.mxu0 %v632
    %636 = vmatpush.msra.mxu0 %v631
    %637 = vmatpush.msra.mxu0 %v630
    %638 = vmatpush.msra.mxu0 %v629
    %639 = vmatpush.msra.mxu0 %v628
    %640 = vmatpush.msra.mxu0 %v627
    %641 = vmatpush.msra.mxu0 %v626
    %642 = vmatpush.msra.mxu0 %v625
    %643 = vmatpush.msra.mxu0 %v624
    %644 = vmatpush.msra.mxu0 %v623
    %645 = vmatpush.msra.mxu0 %v622
    %646 = vmatpush.msra.mxu0 %v621
    %647 = vmatpush.msra.mxu0 %v620
    %648 = vmatpush.msra.mxu0 %v619
    %649 = vmatpush.msra.mxu0 %v618
    %650 = vmatmul.f32.gmra.mxu0 %v469
    %v651 = vpop.f32.mrf.mxu0
    %v652 = vadd.f32 0.0, %v651
    %653 = vmatmul.f32.gmra.mxu0 %v470
    %v654 = vpop.f32.mrf.mxu0
    %v655 = vadd.f32 0.0, %v654
    %656 = vdwg.mxu0
    %657 = vmatpush.msra.mxu0 %v616
    %658 = vmatpush.msra.mxu0 %v615
    %659 = vmatpush.msra.mxu0 %v614
    %660 = vmatpush.msra.mxu0 %v613
    %661 = vmatpush.msra.mxu0 %v612
    %662 = vmatpush.msra.mxu0 %v611
    %663 = vmatpush.msra.mxu0 %v610
    %664 = vmatpush.msra.mxu0 %v609
    %665 = vmatpush.msra.mxu0 %v608
    %666 = vmatpush.msra.mxu0 %v607
    %667 = vmatpush.msra.mxu0 %v606
    %668 = vmatpush.msra.mxu0 %v605
    %669 = vmatpush.msra.mxu0 %v604
    %670 = vmatpush.msra.mxu0 %v603
    %671 = vmatpush.msra.mxu0 %v602
    %672 = vmatpush.msra.mxu0 %v601
    %673 = vmatmul.f32.gmra.mxu0 %v595
    %v674 = vpop.f32.mrf.mxu0
    %v675 = vadd.f32 %v652, %v674
    %676 = vmatmul.f32.gmra.mxu0 %v598
    %v677 = vpop.f32.mrf.mxu0
    %v678 = vadd.f32 %v655, %v677
    %679 = vdwg.mxu0
    %680 = vmatpush.msra.mxu0 0.0
    %681 = vmatpush.msra.mxu0 0.0
    %682 = vmatpush.msra.mxu0 0.0
    %683 = vmatpush.msra.mxu0 0.0
    %684 = vmatpush.msra.mxu0 0.0
    %685 = vmatpush.msra.mxu0 0.0
    %686 = vmatpush.msra.mxu0 0.0
    %687 = vmatpush.msra.mxu0 0.0
    %688 = vmatpush.msra.mxu0 0.0
    %689 = vmatpush.msra.mxu0 0.0
    %690 = vmatpush.msra.mxu0 0.0
    %691 = vmatpush.msra.mxu0 0.0
    %692 = vmatpush.msra.mxu0 0.0
    %693 = vmatpush.msra.mxu0 0.0
    %694 = vmatpush.msra.mxu0 %v470
    %695 = vmatpush.msra.mxu0 %v469
    %696 = vmatmul.f32.gmra.mxu0 %v188
    %v697 = vpop.f32.mrf.mxu0
    %v698 = vadd.f32 0.0, %v697
    %699 = vmatmul.f32.gmra.mxu0 %v191
    %v700 = vpop.f32.mrf.mxu0
    %v701 = vadd.f32 0.0, %v700
    %702 = vdwg.mxu0
    %s703 = scalar_lea.vmem [#allocation2], 1152
    %v704 = vld [vmem:[%s703] sm:$0xff]
    %v705 = vld [vmem:[%s703 + $0x8] sm:$0xff]
    %v706 = vld [vmem:[%s703 + $0x10] sm:$0xff]
    %v707 = vld [vmem:[%s703 + $0x18] sm:$0xff]
    %v708 = vld [vmem:[%s703 + $0x20] sm:$0xff]
    %v709 = vld [vmem:[%s703 + $0x28] sm:$0xff]
    %v710 = vld [vmem:[%s703 + $0x30] sm:$0xff]
    %v711 = vld [vmem:[%s703 + $0x38] sm:$0xff]
    %v712 = vld [vmem:[%s703 + $0x40] sm:$0xff]
    %v713 = vld [vmem:[%s703 + $0x48] sm:$0xff]
    %v714 = vld [vmem:[%s703 + $0x50] sm:$0xff]
    %v715 = vld [vmem:[%s703 + $0x58] sm:$0xff]
    %v716 = vld [vmem:[%s703 + $0x60] sm:$0xff]
    %v717 = vld [vmem:[%s703 + $0x68] sm:$0xff]
    %v718 = vld [vmem:[%s703 + $0x70] sm:$0xff]
    %v719 = vld [vmem:[%s703 + $0x78] sm:$0xff]
    %720 = vmatpush.msra.mxu0 %v719
    %721 = vmatpush.msra.mxu0 %v718
    %722 = vmatpush.msra.mxu0 %v717
    %723 = vmatpush.msra.mxu0 %v716
    %724 = vmatpush.msra.mxu0 %v715
    %725 = vmatpush.msra.mxu0 %v714
    %726 = vmatpush.msra.mxu0 %v713
    %727 = vmatpush.msra.mxu0 %v712
    %728 = vmatpush.msra.mxu0 %v711
    %729 = vmatpush.msra.mxu0 %v710
    %730 = vmatpush.msra.mxu0 %v709
    %731 = vmatpush.msra.mxu0 %v708
    %732 = vmatpush.msra.mxu0 %v707
    %733 = vmatpush.msra.mxu0 %v706
    %734 = vmatpush.msra.mxu0 %v705
    %735 = vmatpush.msra.mxu0 %v704
    %736 = vmatmul.f32.gmra.mxu0 %v698
    %v737 = vpop.f32.mrf.mxu0
    %v738 = vadd.f32 0.0, %v737
    %739 = vmatmul.f32.gmra.mxu0 %v701
    %v740 = vpop.f32.mrf.mxu0
    %v741 = vadd.f32 0.0, %v740
    %742 = vdwg.mxu0
    %v743 = vadd.f32 %v675, %v738
    %v744 = vadd.f32 %v678, %v741
    %s745 = scalar_lea.vmem %s4, 8
    %v746 = vld [vmem:[%s745] sm:$0x1]
    %v748 = vperm.slane %v746, 0
    %v750 = vmul.f32 %v743, %v748
    %v751 = vmul.f32 %v744, %v748
    %s752 = scalar_lea.vmem %s4, 9
    %v753 = vld [vmem:[%s752] sm:$0x1]
    %v755 = vperm.slane %v753, 0
    %v757 = vadd.f32 %v750, %v755
    %v758 = vadd.f32 %v751, %v755
    %759 = vst [vmem:[%s5] sm:$0xff] %v461
    %760 = vst [vmem:[%s5 + $0x8] sm:$0xff] %v462
    %761 = vst [vmem:[#allocation5] sm:$0xff] %v525
    %762 = vst [vmem:[#allocation5 + $0x8] sm:$0xff] %v526
    %s763 = scalar_lea.vmem [#allocation5], 16
    %764 = vst [vmem:[%s763] sm:$0xff] %v575
    %765 = vst [vmem:[%s763 + $0x8] sm:$0xff] %v576
    %s766 = scalar_lea.vmem [#allocation5], 32
    %767 = vst [vmem:[%s766] sm:$0xff] %v757
    %768 = vst [vmem:[%s766 + $0x8] sm:$0xff] %v758
    // Predicated region
    $region26: #{neuronal_cell_backward.1} parent=1 // pred_check
      _
    $region27: #{neuronal_cell_backward.1} parent=1 // pred_check_branch
      %770 = sbr.rel (0) target = $region29
    $region28: #{neuronal_cell_backward.1} parent=1 // pred_region
      _
    $region29: #{neuronal_cell_backward.1} parent=1 // pred_fallthru
      _
    // Predicated region
    $region30: #{neuronal_cell_backward.1} parent=1 // pred_check
      _
    $region31: #{neuronal_cell_backward.1} parent=1 // pred_check_branch
      %772 = sbr.rel (0) target = $region33
    $region32: #{neuronal_cell_backward.1} parent=1 // pred_region
      %774 = vsyncadd [#allocation4], 0
      %s775 = sshll.u32 [#allocation5], 4
      %s776 = int_to_ptr.vmem [resolvable:$true] %s775
      %s777 = sshll.u32 %s6, 4
      %s778 = int_to_ptr.hbm [resolvable:$true] %s777
      %783 = dma.vmem_to_hbm [thread:$0]  %s776, 768, %s778, [#allocation4], 128, 128, 8
    $region33: #{neuronal_cell_backward.1} parent=1 // pred_fallthru
      _
    // Predicated region
    $region34: #{neuronal_cell_backward.1} parent=1 // pred_check
      _
    $region35: #{neuronal_cell_backward.1} parent=1 // pred_check_branch
      %785 = sbr.rel (0) target = $region37
    $region36: #{neuronal_cell_backward.1} parent=1 // pred_region
      _
    $region37: #{neuronal_cell_backward.1} parent=1 // pred_fallthru
      _
    // Predicated region
    $region38: #{neuronal_cell_backward.1} parent=1 // pred_check
      _
    $region39: #{neuronal_cell_backward.1} parent=1 // pred_check_branch
      %787 = sbr.rel (0) target = $region41
    $region40: #{neuronal_cell_backward.1} parent=1 // pred_region
      %789 = dma.done [#allocation4], 768
    $region41: #{neuronal_cell_backward.1} parent=1 // pred_fallthru
      _
    %790 = vsyncpa [#allocation3], 1
    %791 = vsyncpa [#allocation4], 1

</llo_original>
